<compile_context>
chip_gen: v7x
topology: tpu7x:2x2x1
jax: 0.10.0
libtpu: 0.0.40
codegen_flags: <defaults>
</compile_context>

<pallas_src>
import functools
import math

import jax
import jax.numpy as jnp
from jax.experimental import pallas as pl
from jax.experimental.pallas import tpu as pltpu


# --------------------------------------------------------------------------- #
# Helpers (tile / VMEM budgeting)
# --------------------------------------------------------------------------- #
def _round_up(x, m):
    return (x + m - 1) // m * m


def _vmem_cap_bytes():
    """Physical VMEM of the current generation; conservative fallback (v7x)."""
    try:
        info = pltpu.get_tpu_info()
        for name in ("vmem_capacity_bytes", "vmem_size_bytes", "vmem_bytes"):
            cap = getattr(info, name, None)
            if cap:
                return int(cap)
    except Exception:
        pass
    return 64 << 20


def _vmem_estimate(C, W, K, TH, cin_pad, mm_bytes, out_bytes):
    """Rough per-step VMEM footprint (double-buffered blocks + scratch)."""
    P = K // 2
    KK = K * K
    NW = TH * W
    L = (TH + 2 * P) * W + 2 * P
    est = 2 * _round_up(C, 8) * _round_up(L, 128) * mm_bytes            # halo window
    est += 2 * _round_up(C, 8) * _round_up(KK * cin_pad, 128) * mm_bytes  # folded weights
    est += 2 * _round_up(K, 8) * _round_up(NW, 128) * mm_bytes          # column masks
    est += 2 * _round_up(C, 8) * _round_up(NW, 128) * out_bytes         # output block
    est += _round_up(KK * cin_pad, 8) * _round_up(NW, 128) * mm_bytes   # im2col slab
    est += 2 << 20                                                      # misc / internal
    return est


def _pick_h_tile(H, W, C, K, cin_pad, mm_bytes, out_bytes, budget):
    """Largest divisor TH of H with TH*W a multiple of 128 (or TH == H) whose
    per-step VMEM estimate fits the budget."""
    legal = [t for t in range(H, 0, -1)
             if H % t == 0 and (t == H or (t * W) % 128 == 0)]
    for t in legal:
        if _vmem_estimate(C, W, K, t, cin_pad, mm_bytes, out_bytes) <= budget:
            return t
    return legal[-1]


def _pick_n_chunk(NW, Cout, result_budget=1 << 20):
    """Lane-chunk for the final matmul so the live f32 result stays bounded."""
    if NW * Cout * 4 <= result_budget or NW % 128 != 0:
        return NW
    target = max(128, (result_budget // (Cout * 4)) // 128 * 128)
    best = 128
    for d in range(128, min(target, NW) + 1, 128):
        if NW % d == 0:
            best = d
    return best


# --------------------------------------------------------------------------- #
# Kernel
# --------------------------------------------------------------------------- #
def sdft_kernel(wf_ref, fwin_ref, cm_ref, out_ref, patches_ref, *,
                ksize, h_tile, width, cin, cin_pad, n_chunk):
    """Grid = (batch, h_tile) — both axes independent ("parallel").

    wf_ref     : (1, Cout, K*K*Cin_pad)  folded (scale*style*demod) weights
    fwin_ref   : (1, 1, Cin, L)          flattened row-padded halo window,
                                         L = (TH+2P)*W + 2P
    cm_ref     : (K, TH*W)               per-kx column-padding masks (0/1)
    out_ref    : (1, Cout, TH*W)         flattened output rows for this tile
    patches_ref: (K*K*Cin_pad, TH*W)     im2col slab (VMEM scratch)
    """
    K, TH, W = ksize, h_tile, width
    P = K // 2
    KK = K * K
    NW = TH * W

    # Zero the per-tap sublane padding rows (their weight columns are zero in
    # glue, but uninitialized VMEM could hold NaN -> 0*NaN).  Static no-op when
    # Cin is already a multiple of the sublane pack.
    if cin_pad > cin:
        zero_rows = jnp.zeros((cin_pad - cin, NW), patches_ref.dtype)
        for k in range(KK):
            patches_ref[k * cin_pad + cin:(k + 1) * cin_pad, :] = zero_rows

    # im2col: ONE bulk, lane-contiguous copy per tap (K*K total).  The row-wise
    # flattening in glue makes tap (ky,kx) a contiguous slice at static offset
    # ky*W + kx; wrapped columns are zeroed by the precomputed mask.
    for ky in range(K):
        for kx in range(K):
            k = ky * K + kx
            off = ky * W + kx
            val = fwin_ref[0, 0, :, off:off + NW]            # (Cin, NW)
            if kx != P:                                      # zero wrapped cols
                val = val * cm_ref[kx:kx + 1, :]
            patches_ref[k * cin_pad:k * cin_pad + cin, :] = val

    # Single lane-dense matmul (optionally lane-chunked), f32 accumulation.
    wf = wf_ref[0]                                           # (Cout, KK*Cin_pad)
    for c in range(NW // n_chunk):
        lo = c * n_chunk
        res = jnp.dot(wf, patches_ref[:, lo:lo + n_chunk],
                      preferred_element_type=jnp.float32)    # (Cout, n_chunk)
        out_ref[0, :, lo:lo + n_chunk] = res.astype(out_ref.dtype)


# --------------------------------------------------------------------------- #
# Wrapper
# --------------------------------------------------------------------------- #
def sdft_forward(fea, color_style, mod_w, mod_b, weight, kernel_size=3,
                 h_tile=None, mm_dtype=jnp.bfloat16):
    """fea: (B, C, H, W) NCHW, color_style: (B, D, 1, 1). Returns (B, C, H, W).

    mm_dtype: matmul-input dtype (bf16 default; f32 accumulation always)."""
    B, C, H, W = fea.shape
    K = kernel_size
    P = K // 2
    KK = K * K
    D = color_style.shape[1]
    scale = 1.0 / math.sqrt(C * K * K)

    mm_dtype = jnp.dtype(mm_dtype)
    mm_bytes = mm_dtype.itemsize
    out_bytes = jnp.dtype(fea.dtype).itemsize
    sub = 16 if mm_bytes == 2 else 8
    cin_pad = _round_up(C, sub)

    cap = _vmem_cap_bytes()
    if h_tile is None:
        h_tile = _pick_h_tile(H, W, C, K, cin_pad, mm_bytes, out_bytes,
                              budget=int(cap * 0.45))
    TH = h_tile
    if H % TH != 0 or (TH != H and (TH * W) % 128 != 0):
        raise ValueError("h_tile must divide H and give a lane-dense tile "
                         "(h_tile * W % 128 == 0) unless h_tile == H")
    NH = H // TH
    THP = TH + 2 * P
    Hp = H + 2 * P
    NW = TH * W
    L = THP * W + 2 * P

    # ---- fold scale * style * demod into the weights (tiny; done in glue) ---
    style = (color_style.reshape(B, D).astype(jnp.float32)
             @ mod_w.reshape(C, D).astype(jnp.float32).T
             + mod_b.reshape(1, C).astype(jnp.float32))                  # (B, Cin)
    w = scale * weight[0][None].astype(jnp.float32) * style[:, None, :, None, None]
    demod = jax.lax.rsqrt(jnp.sum(w * w, axis=(2, 3, 4)) + 1e-8)         # (B, Cout)
    w = w * demod[:, :, None, None, None]                                # (B,Co,Ci,K,K)
    w = jnp.transpose(w, (0, 1, 3, 4, 2))                                # (B,Co,K,K,Ci)
    if cin_pad > C:
        w = jnp.pad(w, ((0, 0), (0, 0), (0, 0), (0, 0), (0, cin_pad - C)))
    wfold = w.reshape(B, C, KK * cin_pad).astype(mm_dtype)

    # ---- row-padded, flattened, end-padded features + halo windows (HBM) ----
    fea_rpad = jnp.pad(fea, ((0, 0), (0, 0), (P, P), (0, 0)))            # rows only
    flatp = jnp.pad(fea_rpad.reshape(B, C, Hp * W),
                    ((0, 0), (0, 0), (P, P))).astype(mm_dtype)           # (B,C,Hp*W+2P)
    if NH == 1:
        fea_win = flatp[:, None]                                         # (B,1,C,L)
    else:
        fea_win = jnp.stack(
            [flatp[:, :, i * TH * W:i * TH * W + L] for i in range(NH)], axis=1)

    # Column-padding masks: mask[kx, r*W + x] = 1 iff 0 <= x + kx - P < W.
    x = jnp.arange(W)
    col_mask = jnp.stack(
        [jnp.tile((((x + kx - P) >= 0) & ((x + kx - P) < W)).astype(mm_dtype), TH)
         for kx in range(K)], axis=0)                                    # (K, NW)

    n_chunk = _pick_n_chunk(NW, C)
    est = _vmem_estimate(C, W, K, TH, cin_pad, mm_bytes, out_bytes)
    vmem_limit = int(min(max(2 * est, 32 << 20), int(cap * 0.9)))

    kernel = functools.partial(sdft_kernel, ksize=K, h_tile=TH, width=W,
                               cin=C, cin_pad=cin_pad, n_chunk=n_chunk)

    out_flat = pl.pallas_call(
        kernel,
        out_shape=jax.ShapeDtypeStruct((B, C, H * W), fea.dtype),
        grid=(B, NH),
        in_specs=[
            pl.BlockSpec((1, C, KK * cin_pad), lambda b, h: (b, 0, 0)),
            pl.BlockSpec((1, 1, C, L), lambda b, h: (b, h, 0, 0)),
            pl.BlockSpec((K, NW), lambda b, h: (0, 0)),
        ],
        out_specs=pl.BlockSpec((1, C, NW), lambda b, h: (b, 0, h)),
        scratch_shapes=[pltpu.VMEM((KK * cin_pad, NW), mm_dtype)],
        compiler_params=pltpu.CompilerParams(
            dimension_semantics=("parallel", "parallel"),
            vmem_limit_bytes=vmem_limit),
    )(wfold, fea_win, col_mask)

    return out_flat.reshape(B, C, H, W)      # free (contiguous) reshape


# --------------------------------------------------------------------------- #
# Pure-JAX reference (mirror of the PyTorch forward) for verification
# --------------------------------------------------------------------------- #
def sdft_reference(fea, color_style, mod_w, mod_b, weight, kernel_size=3):
    B, C, H, W = fea.shape
    K = kernel_size
    P = K // 2
    scale = 1.0 / math.sqrt(C * K * K)

    style = jnp.einsum('bd,cd->bc', color_style[:, :, 0, 0], mod_w[:, :, 0, 0]) + mod_b
    w = scale * weight[0][None] * style[:, None, :, None, None]      # (B,Co,Ci,K,K)
    demod = jax.lax.rsqrt(jnp.sum(w * w, axis=(2, 3, 4)) + 1e-8)     # (B,Co)
    w = w * demod[:, :, None, None, None]

    fea_pad = jnp.pad(fea, ((0, 0), (0, 0), (P, P), (P, P)))
    out = jnp.zeros((B, C, H, W), jnp.float32)
    for ky in range(K):
        for kx in range(K):
            out = out + jnp.einsum('bihw,boi->bohw',
                                   fea_pad[:, :, ky:ky + H, kx:kx + W],
                                   w[:, :, :, ky, kx])
    return out.astype(fea.dtype)


if __name__ == "__main__":
    B, C, H, W = 2, 4, 16, 16
    color_dim = 8
    K = 3

    key = jax.random.PRNGKey(0)
    k1, k2, k3, k4, k5 = jax.random.split(key, 5)

    fea = jax.random.normal(k1, (B, C, H, W), dtype=jnp.float32)
    color_style = jax.random.normal(k2, (B, color_dim, 1, 1), dtype=jnp.float32)
    mod_w = jax.random.normal(k3, (C, color_dim, 1, 1), dtype=jnp.float32) * 0.1
    mod_b = jax.random.normal(k4, (C,), dtype=jnp.float32) * 0.1
    weight = jax.random.normal(k5, (1, C, C, K, K), dtype=jnp.float32)

    ref = sdft_reference(fea, color_style, mod_w, mod_b, weight, kernel_size=K)

    # 1) exact-math path (f32 matmul inputs), auto tile (single tile here)
    out_f32 = sdft_forward(fea, color_style, mod_w, mod_b, weight, kernel_size=K,
                           mm_dtype=jnp.float32)
    out_f32 = jax.block_until_ready(out_f32)
    assert out_f32.shape == (B, C, H, W)
    err = float(jnp.max(jnp.abs(out_f32 - ref)))
    assert err < 1e-4, f"f32 max abs err {err}"

    # 2) f32 path with explicit H tiling (exercises the halo-window multi-tile path)
    out_t = sdft_forward(fea, color_style, mod_w, mod_b, weight, kernel_size=K,
                         mm_dtype=jnp.float32, h_tile=8)
    out_t = jax.block_until_ready(out_t)
    err_t = float(jnp.max(jnp.abs(out_t - ref)))
    assert err_t < 1e-4, f"tiled f32 max abs err {err_t}"

    # 3) default bf16 MXU path (f32 accumulation) — fast path on v5e/v6e/v7x
    out_bf = sdft_forward(fea, color_style, mod_w, mod_b, weight, kernel_size=K)
    out_bf = jax.block_until_ready(out_bf)
    err_bf = float(jnp.max(jnp.abs(out_bf - ref)))
    assert err_bf < 0.15, f"bf16 max abs err {err_bf}"

    print("KERNEL_OK")
</pallas_src>

<mosaic_0001>
module attributes {stable_mosaic.version = 11 : i64} {
  func.func @sdft_kernel(%arg0: i32, %arg1: i32, %arg2: memref<1x4x72xf32, #tpu.memory_space<vmem>>, %arg3: memref<1x1x4x290xf32, #tpu.memory_space<vmem>>, %arg4: memref<3x256xf32, #tpu.memory_space<vmem>>, %arg5: memref<1x4x256xf32, #tpu.memory_space<vmem>>, %arg6: memref<72x256xf32, #tpu.memory_space<vmem>>) attributes {dimension_semantics = [#tpu.dimension_semantics<parallel>, #tpu.dimension_semantics<parallel>], iteration_bounds = array<i64: 2, 1>, scalar_prefetch = 0 : i64, scratch_operands = 1 : i64, tpu.core_type = #tpu.core_type<tc>, window_params = [{transform_indices = @transform_0, window_bounds = array<i64: 1, 4, 72>}, {transform_indices = @transform_1, window_bounds = array<i64: 1, 1, 4, 290>}, {pipeline_mode = #tpu.pipeline_mode<synchronous>, transform_indices = @transform_2, window_bounds = array<i64: 3, 256>}, {transform_indices = @transform_3, window_bounds = array<i64: 1, 4, 256>}]} {
    %cst = arith.constant 0.000000e+00 : f32
    %0 = vector.broadcast %cst : f32 to vector<4x256xf32>
    %c4 = arith.constant 4 : index
    %c0 = arith.constant 0 : index
    %1 = vector.load %arg6[%c4, %c0] : memref<72x256xf32, #tpu.memory_space<vmem>>, vector<4x256xf32>
    tpu.vector_store %arg6[%c4, %c0], %0 {strides = array<i32>} : memref<72x256xf32, #tpu.memory_space<vmem>>, vector<4x256xf32>,
    %c12 = arith.constant 12 : index
    %c0_0 = arith.constant 0 : index
    %2 = vector.load %arg6[%c12, %c0_0] : memref<72x256xf32, #tpu.memory_space<vmem>>, vector<4x256xf32>
    tpu.vector_store %arg6[%c12, %c0_0], %0 {strides = array<i32>} : memref<72x256xf32, #tpu.memory_space<vmem>>, vector<4x256xf32>,
    %c20 = arith.constant 20 : index
    %c0_1 = arith.constant 0 : index
    %3 = vector.load %arg6[%c20, %c0_1] : memref<72x256xf32, #tpu.memory_space<vmem>>, vector<4x256xf32>
    tpu.vector_store %arg6[%c20, %c0_1], %0 {strides = array<i32>} : memref<72x256xf32, #tpu.memory_space<vmem>>, vector<4x256xf32>,
    %c28 = arith.constant 28 : index
    %c0_2 = arith.constant 0 : index
    %4 = vector.load %arg6[%c28, %c0_2] : memref<72x256xf32, #tpu.memory_space<vmem>>, vector<4x256xf32>
    tpu.vector_store %arg6[%c28, %c0_2], %0 {strides = array<i32>} : memref<72x256xf32, #tpu.memory_space<vmem>>, vector<4x256xf32>,
    %c36 = arith.constant 36 : index
    %c0_3 = arith.constant 0 : index
    %5 = vector.load %arg6[%c36, %c0_3] : memref<72x256xf32, #tpu.memory_space<vmem>>, vector<4x256xf32>
    tpu.vector_store %arg6[%c36, %c0_3], %0 {strides = array<i32>} : memref<72x256xf32, #tpu.memory_space<vmem>>, vector<4x256xf32>,
    %c44 = arith.constant 44 : index
    %c0_4 = arith.constant 0 : index
    %6 = vector.load %arg6[%c44, %c0_4] : memref<72x256xf32, #tpu.memory_space<vmem>>, vector<4x256xf32>
    tpu.vector_store %arg6[%c44, %c0_4], %0 {strides = array<i32>} : memref<72x256xf32, #tpu.memory_space<vmem>>, vector<4x256xf32>,
    %c52 = arith.constant 52 : index
    %c0_5 = arith.constant 0 : index
    %7 = vector.load %arg6[%c52, %c0_5] : memref<72x256xf32, #tpu.memory_space<vmem>>, vector<4x256xf32>
    tpu.vector_store %arg6[%c52, %c0_5], %0 {strides = array<i32>} : memref<72x256xf32, #tpu.memory_space<vmem>>, vector<4x256xf32>,
    %c60 = arith.constant 60 : index
    %c0_6 = arith.constant 0 : index
    %8 = vector.load %arg6[%c60, %c0_6] : memref<72x256xf32, #tpu.memory_space<vmem>>, vector<4x256xf32>
    tpu.vector_store %arg6[%c60, %c0_6], %0 {strides = array<i32>} : memref<72x256xf32, #tpu.memory_space<vmem>>, vector<4x256xf32>,
    %c68 = arith.constant 68 : index
    %c0_7 = arith.constant 0 : index
    %9 = vector.load %arg6[%c68, %c0_7] : memref<72x256xf32, #tpu.memory_space<vmem>>, vector<4x256xf32>
    tpu.vector_store %arg6[%c68, %c0_7], %0 {strides = array<i32>} : memref<72x256xf32, #tpu.memory_space<vmem>>, vector<4x256xf32>,
    %c0_8 = arith.constant 0 : index
    %c0_9 = arith.constant 0 : index
    %c0_10 = arith.constant 0 : index
    %c0_11 = arith.constant 0 : index
    %10 = vector.load %arg3[%c0_8, %c0_9, %c0_10, %c0_11] : memref<1x1x4x290xf32, #tpu.memory_space<vmem>>, vector<1x1x4x256xf32>
    %11 = vector.shape_cast %10 : vector<1x1x4x256xf32> to vector<4x256xf32>
    %c0_12 = arith.constant 0 : index
    %c0_13 = arith.constant 0 : index
    %12 = vector.load %arg4[%c0_12, %c0_13] : memref<3x256xf32, #tpu.memory_space<vmem>>, vector<1x256xf32>
    %13 = vector.broadcast %12 : vector<1x256xf32> to vector<4x256xf32>
    %14 = arith.mulf %11, %13 : vector<4x256xf32>
    %c0_14 = arith.constant 0 : index
    %c0_15 = arith.constant 0 : index
    %15 = vector.load %arg6[%c0_14, %c0_15] : memref<72x256xf32, #tpu.memory_space<vmem>>, vector<4x256xf32>
    tpu.vector_store %arg6[%c0_14, %c0_15], %14 {strides = array<i32>} : memref<72x256xf32, #tpu.memory_space<vmem>>, vector<4x256xf32>,
    %c0_16 = arith.constant 0 : index
    %c0_17 = arith.constant 0 : index
    %c0_18 = arith.constant 0 : index
    %c1 = arith.constant 1 : index
    %16 = vector.load %arg3[%c0_16, %c0_17, %c0_18, %c1] : memref<1x1x4x290xf32, #tpu.memory_space<vmem>>, vector<1x1x4x256xf32>
    %17 = vector.shape_cast %16 : vector<1x1x4x256xf32> to vector<4x256xf32>
    %c8 = arith.constant 8 : index
    %c0_19 = arith.constant 0 : index
    %18 = vector.load %arg6[%c8, %c0_19] : memref<72x256xf32, #tpu.memory_space<vmem>>, vector<4x256xf32>
    tpu.vector_store %arg6[%c8, %c0_19], %17 {strides = array<i32>} : memref<72x256xf32, #tpu.memory_space<vmem>>, vector<4x256xf32>,
    %c0_20 = arith.constant 0 : index
    %c0_21 = arith.constant 0 : index
    %c0_22 = arith.constant 0 : index
    %c2 = arith.constant 2 : index
    %19 = vector.load %arg3[%c0_20, %c0_21, %c0_22, %c2] : memref<1x1x4x290xf32, #tpu.memory_space<vmem>>, vector<1x1x4x256xf32>
    %20 = vector.shape_cast %19 : vector<1x1x4x256xf32> to vector<4x256xf32>
    %c2_23 = arith.constant 2 : index
    %c0_24 = arith.constant 0 : index
    %21 = vector.load %arg4[%c2_23, %c0_24] : memref<3x256xf32, #tpu.memory_space<vmem>>, vector<1x256xf32>
    %22 = vector.broadcast %21 : vector<1x256xf32> to vector<4x256xf32>
    %23 = arith.mulf %20, %22 : vector<4x256xf32>
    %c16 = arith.constant 16 : index
    %c0_25 = arith.constant 0 : index
    %24 = vector.load %arg6[%c16, %c0_25] : memref<72x256xf32, #tpu.memory_space<vmem>>, vector<4x256xf32>
    tpu.vector_store %arg6[%c16, %c0_25], %23 {strides = array<i32>} : memref<72x256xf32, #tpu.memory_space<vmem>>, vector<4x256xf32>,
    %c0_26 = arith.constant 0 : index
    %c0_27 = arith.constant 0 : index
    %c0_28 = arith.constant 0 : index
    %c16_29 = arith.constant 16 : index
    %25 = vector.load %arg3[%c0_26, %c0_27, %c0_28, %c16_29] : memref<1x1x4x290xf32, #tpu.memory_space<vmem>>, vector<1x1x4x256xf32>
    %26 = vector.shape_cast %25 : vector<1x1x4x256xf32> to vector<4x256xf32>
    %c0_30 = arith.constant 0 : index
    %c0_31 = arith.constant 0 : index
    %27 = vector.load %arg4[%c0_30, %c0_31] : memref<3x256xf32, #tpu.memory_space<vmem>>, vector<1x256xf32>
    %28 = vector.broadcast %27 : vector<1x256xf32> to vector<4x256xf32>
    %29 = arith.mulf %26, %28 : vector<4x256xf32>
    %c24 = arith.constant 24 : index
    %c0_32 = arith.constant 0 : index
    %30 = vector.load %arg6[%c24, %c0_32] : memref<72x256xf32, #tpu.memory_space<vmem>>, vector<4x256xf32>
    tpu.vector_store %arg6[%c24, %c0_32], %29 {strides = array<i32>} : memref<72x256xf32, #tpu.memory_space<vmem>>, vector<4x256xf32>,
    %c0_33 = arith.constant 0 : index
    %c0_34 = arith.constant 0 : index
    %c0_35 = arith.constant 0 : index
    %c17 = arith.constant 17 : index
    %31 = vector.load %arg3[%c0_33, %c0_34, %c0_35, %c17] : memref<1x1x4x290xf32, #tpu.memory_space<vmem>>, vector<1x1x4x256xf32>
    %32 = vector.shape_cast %31 : vector<1x1x4x256xf32> to vector<4x256xf32>
    %c32 = arith.constant 32 : index
    %c0_36 = arith.constant 0 : index
    %33 = vector.load %arg6[%c32, %c0_36] : memref<72x256xf32, #tpu.memory_space<vmem>>, vector<4x256xf32>
    tpu.vector_store %arg6[%c32, %c0_36], %32 {strides = array<i32>} : memref<72x256xf32, #tpu.memory_space<vmem>>, vector<4x256xf32>,
    %c0_37 = arith.constant 0 : index
    %c0_38 = arith.constant 0 : index
    %c0_39 = arith.constant 0 : index
    %c18 = arith.constant 18 : index
    %34 = vector.load %arg3[%c0_37, %c0_38, %c0_39, %c18] : memref<1x1x4x290xf32, #tpu.memory_space<vmem>>, vector<1x1x4x256xf32>
    %35 = vector.shape_cast %34 : vector<1x1x4x256xf32> to vector<4x256xf32>
    %c2_40 = arith.constant 2 : index
    %c0_41 = arith.constant 0 : index
    %36 = vector.load %arg4[%c2_40, %c0_41] : memref<3x256xf32, #tpu.memory_space<vmem>>, vector<1x256xf32>
    %37 = vector.broadcast %36 : vector<1x256xf32> to vector<4x256xf32>
    %38 = arith.mulf %35, %37 : vector<4x256xf32>
    %c40 = arith.constant 40 : index
    %c0_42 = arith.constant 0 : index
    %39 = vector.load %arg6[%c40, %c0_42] : memref<72x256xf32, #tpu.memory_space<vmem>>, vector<4x256xf32>
    tpu.vector_store %arg6[%c40, %c0_42], %38 {strides = array<i32>} : memref<72x256xf32, #tpu.memory_space<vmem>>, vector<4x256xf32>,
    %c0_43 = arith.constant 0 : index
    %c0_44 = arith.constant 0 : index
    %c0_45 = arith.constant 0 : index
    %c32_46 = arith.constant 32 : index
    %40 = vector.load %arg3[%c0_43, %c0_44, %c0_45, %c32_46] : memref<1x1x4x290xf32, #tpu.memory_space<vmem>>, vector<1x1x4x256xf32>
    %41 = vector.shape_cast %40 : vector<1x1x4x256xf32> to vector<4x256xf32>
    %c0_47 = arith.constant 0 : index
    %c0_48 = arith.constant 0 : index
    %42 = vector.load %arg4[%c0_47, %c0_48] : memref<3x256xf32, #tpu.memory_space<vmem>>, vector<1x256xf32>
    %43 = vector.broadcast %42 : vector<1x256xf32> to vector<4x256xf32>
    %44 = arith.mulf %41, %43 : vector<4x256xf32>
    %c48 = arith.constant 48 : index
    %c0_49 = arith.constant 0 : index
    %45 = vector.load %arg6[%c48, %c0_49] : memref<72x256xf32, #tpu.memory_space<vmem>>, vector<4x256xf32>
    tpu.vector_store %arg6[%c48, %c0_49], %44 {strides = array<i32>} : memref<72x256xf32, #tpu.memory_space<vmem>>, vector<4x256xf32>,
    %c0_50 = arith.constant 0 : index
    %c0_51 = arith.constant 0 : index
    %c0_52 = arith.constant 0 : index
    %c33 = arith.constant 33 : index
    %46 = vector.load %arg3[%c0_50, %c0_51, %c0_52, %c33] : memref<1x1x4x290xf32, #tpu.memory_space<vmem>>, vector<1x1x4x256xf32>
    %47 = vector.shape_cast %46 : vector<1x1x4x256xf32> to vector<4x256xf32>
    %c56 = arith.constant 56 : index
    %c0_53 = arith.constant 0 : index
    %48 = vector.load %arg6[%c56, %c0_53] : memref<72x256xf32, #tpu.memory_space<vmem>>, vector<4x256xf32>
    tpu.vector_store %arg6[%c56, %c0_53], %47 {strides = array<i32>} : memref<72x256xf32, #tpu.memory_space<vmem>>, vector<4x256xf32>,
    %c0_54 = arith.constant 0 : index
    %c0_55 = arith.constant 0 : index
    %c0_56 = arith.constant 0 : index
    %c34 = arith.constant 34 : index
    %49 = vector.load %arg3[%c0_54, %c0_55, %c0_56, %c34] : memref<1x1x4x290xf32, #tpu.memory_space<vmem>>, vector<1x1x4x256xf32>
    %50 = vector.shape_cast %49 : vector<1x1x4x256xf32> to vector<4x256xf32>
    %c2_57 = arith.constant 2 : index
    %c0_58 = arith.constant 0 : index
    %51 = vector.load %arg4[%c2_57, %c0_58] : memref<3x256xf32, #tpu.memory_space<vmem>>, vector<1x256xf32>
    %52 = vector.broadcast %51 : vector<1x256xf32> to vector<4x256xf32>
    %53 = arith.mulf %50, %52 : vector<4x256xf32>
    %c64 = arith.constant 64 : index
    %c0_59 = arith.constant 0 : index
    %54 = vector.load %arg6[%c64, %c0_59] : memref<72x256xf32, #tpu.memory_space<vmem>>, vector<4x256xf32>
    tpu.vector_store %arg6[%c64, %c0_59], %53 {strides = array<i32>} : memref<72x256xf32, #tpu.memory_space<vmem>>, vector<4x256xf32>,
    %c0_60 = arith.constant 0 : index
    %c0_61 = arith.constant 0 : index
    %c0_62 = arith.constant 0 : index
    %55 = vector.load %arg2[%c0_60, %c0_61, %c0_62] : memref<1x4x72xf32, #tpu.memory_space<vmem>>, vector<1x4x72xf32>
    %56 = vector.shape_cast %55 : vector<1x4x72xf32> to vector<4x72xf32>
    %c0_63 = arith.constant 0 : index
    %c0_64 = arith.constant 0 : index
    %57 = vector.load %arg6[%c0_63, %c0_64] : memref<72x256xf32, #tpu.memory_space<vmem>>, vector<72x256xf32>
    %cst_65 = arith.constant dense<0.000000e+00> : vector<4x256xf32>
    %58 = tpu.matmul %56, %57, %cst_65 {dimension_numbers = #tpu.dot_dimension_numbers<[1], [0], [0], [1], [0, 0, 1, 1], [], []>} : vector<4x72xf32>, vector<72x256xf32>, vector<4x256xf32> -> vector<4x256xf32>
    %c0_66 = arith.constant 0 : index
    %c0_67 = arith.constant 0 : index
    %c0_68 = arith.constant 0 : index
    %59 = vector.load %arg5[%c0_66, %c0_67, %c0_68] : memref<1x4x256xf32, #tpu.memory_space<vmem>>, vector<1x4x256xf32>
    %60 = vector.shape_cast %59 : vector<1x4x256xf32> to vector<4x256xf32>
    %61 = vector.shape_cast %58 : vector<4x256xf32> to vector<1x4x256xf32>
    tpu.vector_store %arg5[%c0_66, %c0_67, %c0_68], %61 {strides = array<i32>} : memref<1x4x256xf32, #tpu.memory_space<vmem>>, vector<1x4x256xf32>,
    return
  }
  func.func @transform_0(%arg0: i32, %arg1: i32) -> (i32, i32, i32) {
    %c0_i32 = arith.constant 0 : i32
    %c0_i32_0 = arith.constant 0 : i32
    %c0_i32_1 = arith.constant 0 : i32
    return %arg0, %c0_i32, %c0_i32_0 : i32, i32, i32
  }
  func.func @transform_1(%arg0: i32, %arg1: i32) -> (i32, i32, i32, i32) {
    %c0_i32 = arith.constant 0 : i32
    %c0_i32_0 = arith.constant 0 : i32
    %c0_i32_1 = arith.constant 0 : i32
    return %arg0, %arg1, %c0_i32, %c0_i32_0 : i32, i32, i32, i32
  }
  func.func @transform_2(%arg0: i32, %arg1: i32) -> (i32, i32) {
    %c0_i32 = arith.constant 0 : i32
    %c0_i32_0 = arith.constant 0 : i32
    %c0_i32_1 = arith.constant 0 : i32
    return %c0_i32, %c0_i32_0 : i32, i32
  }
  func.func @transform_3(%arg0: i32, %arg1: i32) -> (i32, i32, i32) {
    %c0_i32 = arith.constant 0 : i32
    %c0_i32_0 = arith.constant 0 : i32
    return %arg0, %c0_i32, %arg1 : i32, i32, i32
  }
}

</mosaic_0001>

<llo_original>
// kernel: tpu_custom_call.1
$region0: #{tpu_custom_call.1}
  #allocation0 [shape = 'u32[]', space=smem, size = 0x4, offset = 0x4, fixed_abs, tag = 'smem constant byte address 0x4 - core index']
  #allocation1 [shape = 'u32[144,128]{1,0:T(1,128)}', space=vmem, size = 0x12000, scoped, tag = 'internal scratch']
  #allocation2 [shape = 'f32[72,256]{1,0:T(8,128)}', space=vmem, size = 0x12000, scoped, tag = 'scratch operand']
  %s0 = inlined_call_operand.hbm [shape: f32[2,4,72], index: 0, kind: input, shape index: {}]
  %s1 = inlined_call_operand.hbm [shape: f32[2,1,4,290], index: 1, kind: input, shape index: {}]
  %s2 = inlined_call_operand.hbm [shape: f32[3,256], index: 2, kind: input, shape index: {}]
  %s3 = inlined_call_operand.hbm [shape: f32[2,4,256], index: 3, kind: output, shape index: {}]
  %s4 = sld [smem:[#allocation0]]
  $region57: #{tpu_custom_call.1} parent=0
    _
  %s6 = ssub.s32 1, %s4
  %s7 = scalar_select 0, %s6, %s4
  $region1: #{tpu_custom_call.1} parent=0
    #allocation3 [shape = 'u8[4096]{0}', space=vmem, size = 0x1000, scoped, tag = 'input window, operand 0']
    #allocation4 [shape = 's32[2]{0}', space=sflag, size = 0x8, scoped, tag = 'scoped memory for tpu_custom_call.1']
    #allocation5 [shape = 's32[2]{0}', space=sflag, size = 0x8, scoped, tag = 'scoped memory for tpu_custom_call.1']
    #allocation6 [shape = 'u8[12288]{0}', space=vmem, size = 0x3000, scoped, tag = 'input window, operand 1']
    #allocation7 [shape = 's32[2]{0}', space=sflag, size = 0x8, scoped, tag = 'scoped memory for tpu_custom_call.1']
    #allocation8 [shape = 'u8[4096]{0}', space=vmem, size = 0x1000, scoped, tag = 'input window, operand 2, single buffered']
    #allocation9 [shape = 'u8[8192]{0}', space=vmem, size = 0x2000, scoped, tag = 'output window, operand 0']
    %8 = vsyncpa [#allocation4], 0
    %s9 = scalar_lea.sflag [#allocation4], 1
    %10 = vsyncpa %s9, 0
    %11 = vsyncpa [#allocation7], 0
    %s12 = scalar_lea.sflag [#allocation7], 1
    %13 = vsyncpa %s12, 0
    %14 = vsyncpa [#allocation5], 0
    %s15 = scalar_lea.sflag [#allocation5], 1
    %16 = vsyncpa %s15, 0
    loop: start=0, step=1, limit=4
    $region2: #{tpu_custom_call.1} parent=1 // loop_pre_header
      _
    $region3: #{tpu_custom_call.1} parent=1 // loop_header
      %s18 = sphi 0, %s22
      %p19 = scmp.ge.s32.totalorder %s18, 4
      %s25 = sphi 0, %s37
      %s26 = sphi 0, %s33
      %s27 = sphi 0, %s25
      %s28 = sphi 0, %s26
      %s29 = sphi 0, %s27
      %s30 = sphi 0, %s28
      %s40 = sphi 0, %s42
      %s43 = sphi 0, %s40
      %s44 = sphi 0, %s43
      %s60 = sphi 0, %s44
      %s68 = sphi 0, %s70
      %s71 = sphi 0, %s68
      %s72 = sphi 0, %s71
      %s88 = sphi 0, %s72
      %s92 = sphi 0, %s92
      %s94 = sphi 0, %s92
      %s95 = sphi 0, %s94
      %s109 = sphi 0, %s95
      %s117 = sphi 0, %s119
      %s120 = sphi 0, %s117
      %s121 = sphi 0, %s120
      %s137 = sphi 0, %s121
    $region4: #{tpu_custom_call.1} parent=1 // loop_header_branch
      %21 = sbr.rel (%p19) target = $region8
    $region5: #{tpu_custom_call.1} parent=1 // loop_body
      %s23 = ssub.s32 %s18, 1
      %s24 = ssub.s32 %s18, 2
      %s31 = sadd.s32 1, %s26
      %p32 = scmp.ge.s32.totalorder %s31, 1
      %s33 = scalar_select %p32, 0, %s31
      %s34 = sadd.s32 1, %s25
      %s35 = scalar_select %p32, %s34, %s25
      %p36 = scmp.ge.s32.totalorder %s35, 2
      %s37 = scalar_select %p36, 0, %s35
      %s38 = ssub.s32 %s25, %s37
      %p39 = scmp.eq.s32.totalorder %s38, 0
      %s41 = sadd.s32 %s40, 1
      %s42 = scalar_select %p39, %s40, %s41
      %p45 = pneg %p39
      %p46 = scmp.eq.s32.totalorder %s18, 1
      %p47 = por %p45, %p46
      %p48 = scmp.ne.s32.totalorder %s40, %s43
      %p49 = scmp.eq.s32.totalorder %s18, 0
      %p50 = por %p48, %p49
      %p51 = scmp.ne.s32.totalorder %s40, %s43
      %p52 = scmp.eq.s32.totalorder %s23, 1
      %p53 = por %p51, %p52
      %p54 = scmp.ne.s32.totalorder %s43, %s44
      %p55 = scmp.eq.s32.totalorder %s23, 0
      %p56 = por %p54, %p55
      %p57 = scmp.ne.s32.totalorder %s43, %s44
      %p58 = scmp.eq.s32.totalorder %s24, 1
      %p59 = por %p57, %p58
      %p61 = scmp.ne.s32.totalorder %s44, %s60
      %p62 = scmp.eq.s32.totalorder %s24, 0
      %p63 = por %p61, %p62
      %s64 = ssub.s32 %s25, %s37
      %s65 = ssub.s32 %s26, %s33
      %s66 = sor.u32 %s64, %s65
      %p67 = scmp.eq.s32.totalorder %s66, 0
      %s69 = sadd.s32 %s68, 1
      %s70 = scalar_select %p67, %s68, %s69
      %p73 = pneg %p67
      %p74 = scmp.eq.s32.totalorder %s18, 1
      %p75 = por %p73, %p74
      %p76 = scmp.ne.s32.totalorder %s68, %s71
      %p77 = scmp.eq.s32.totalorder %s18, 0
      %p78 = por %p76, %p77
      %p79 = scmp.ne.s32.totalorder %s68, %s71
      %p80 = scmp.eq.s32.totalorder %s23, 1
      %p81 = por %p79, %p80
      %p82 = scmp.ne.s32.totalorder %s71, %s72
      %p83 = scmp.eq.s32.totalorder %s23, 0
      %p84 = por %p82, %p83
      %p85 = scmp.ne.s32.totalorder %s71, %s72
      %p86 = scmp.eq.s32.totalorder %s24, 1
      %p87 = por %p85, %p86
      %p89 = scmp.ne.s32.totalorder %s72, %s88
      %p90 = scmp.eq.s32.totalorder %s24, 0
      %p91 = por %p89, %p90
      %s93 = sadd.s32 %s92, 1
      %p96 = scmp.eq.s32.totalorder %s18, 1
      %p97 = scmp.ne.s32.totalorder %s92, %s94
      %p98 = scmp.eq.s32.totalorder %s18, 0
      %p99 = por %p97, %p98
      %p100 = scmp.ne.s32.totalorder %s92, %s94
      %p101 = scmp.eq.s32.totalorder %s23, 1
      %p102 = por %p100, %p101
      %p103 = scmp.ne.s32.totalorder %s94, %s95
      %p104 = scmp.eq.s32.totalorder %s23, 0
      %p105 = por %p103, %p104
      %p106 = scmp.ne.s32.totalorder %s94, %s95
      %p107 = scmp.eq.s32.totalorder %s24, 1
      %p108 = por %p106, %p107
      %p110 = scmp.ne.s32.totalorder %s95, %s109
      %p111 = scmp.eq.s32.totalorder %s24, 0
      %p112 = por %p110, %p111
      %s113 = ssub.s32 %s25, %s37
      %s114 = ssub.s32 %s26, %s33
      %s115 = sor.u32 %s113, %s114
      %p116 = scmp.eq.s32.totalorder %s115, 0
      %s118 = sadd.s32 %s117, 1
      %s119 = scalar_select %p116, %s117, %s118
      %p122 = pneg %p116
      %p123 = scmp.eq.s32.totalorder %s18, 1
      %p124 = por %p122, %p123
      %p125 = scmp.ne.s32.totalorder %s117, %s120
      %p126 = scmp.eq.s32.totalorder %s18, 0
      %p127 = por %p125, %p126
      %p128 = scmp.ne.s32.totalorder %s117, %s120
      %p129 = scmp.eq.s32.totalorder %s23, 1
      %p130 = por %p128, %p129
      %p131 = scmp.ne.s32.totalorder %s120, %s121
      %p132 = scmp.eq.s32.totalorder %s23, 0
      %p133 = por %p131, %p132
      %p134 = scmp.ne.s32.totalorder %s120, %s121
      %p135 = scmp.eq.s32.totalorder %s24, 1
      %p136 = por %p134, %p135
      %p138 = scmp.ne.s32.totalorder %s121, %s137
      %p139 = scmp.eq.s32.totalorder %s24, 0
      %p140 = por %p138, %p139
      %p141 = scmp.le.s32.totalorder 1, %s18
      %p142 = scmp.lt.s32.totalorder %s18, 3
      %p143 = pnand %p141, %p142
      %p144 = pneg %p143
      // Predicated region
      $region9: #{tpu_custom_call.1} parent=5 // pred_check
        _
      $region10: #{tpu_custom_call.1} parent=5 // pred_check_branch
        %146 = sbr.rel (%p143) target = $region12
      $region11: #{tpu_custom_call.1} parent=5 // pred_region
        %s147 = ssub.s32 %s18, 1
        // Predicated region
        $region13: #{tpu_custom_call.1} parent=11 // pred_check
          %p148 = pneg %p105
        $region14: #{tpu_custom_call.1} parent=11 // pred_check_branch
          %150 = sbr.rel (%p148) target = $region16
        $region15: #{tpu_custom_call.1} parent=11 // pred_region
          %s152 = ssub.s32 128, 128
          %153 = vsyncadd [#allocation7], %s152
          %s155 = sshll.u32 [#allocation8], 4
          %s156 = int_to_ptr.vmem [resolvable:$true] %s155
          %158 = dma.hbm_to_vmem [thread:$0]  %s2, 128, %s156, [#allocation7]
        $region16: #{tpu_custom_call.1} parent=11 // pred_fallthru
          _
      $region12: #{tpu_custom_call.1} parent=5 // pred_fallthru
        _
      %p159 = scmp.lt.s32.totalorder %s18, 2
      // Predicated region
      $region17: #{tpu_custom_call.1} parent=5 // pred_check
        %p160 = pneg %p159
      $region18: #{tpu_custom_call.1} parent=5 // pred_check_branch
        %162 = sbr.rel (%p160) target = $region20
      $region19: #{tpu_custom_call.1} parent=5 // pred_region
        // Predicated region
        $region21: #{tpu_custom_call.1} parent=19 // pred_check
          %p163 = pneg %p50
        $region22: #{tpu_custom_call.1} parent=19 // pred_check_branch
          %165 = sbr.rel (%p163) target = $region24
        $region23: #{tpu_custom_call.1} parent=19 // pred_region
          %s166 = sand.u32 %s40, 1
          %s167 = scalar_lea.sflag [#allocation4], %s166
          %s168 = sand.u32 %s40, 1
          %s169 = smul.addr %s168, 4
          %s170 = scalar_lea.vmem [#allocation3], %s169
          %s172 = ssub.s32 64, 64
          %173 = vsyncadd %s167, %s172
          %s174 = smul.addr %s25, 64
          %s175 = scalar_lea.hbm %s0, %s174
          %s177 = sshll.u32 %s170, 4
          %s178 = int_to_ptr.vmem [resolvable:$true] %s177
          %180 = dma.hbm_to_vmem [thread:$0]  %s175, 64, %s178, %s167
        $region24: #{tpu_custom_call.1} parent=19 // pred_fallthru
          _
        // Predicated region
        $region25: #{tpu_custom_call.1} parent=19 // pred_check
          %p181 = pneg %p78
        $region26: #{tpu_custom_call.1} parent=19 // pred_check_branch
          %183 = sbr.rel (%p181) target = $region28
        $region27: #{tpu_custom_call.1} parent=19 // pred_region
          %s184 = sand.u32 %s18, 1
          %s185 = scalar_lea.sflag [#allocation7], %s184
          %s186 = sand.u32 %s68, 1
          %s187 = smul.addr %s186, 12
          %s188 = scalar_lea.vmem [#allocation6], %s187
          %s190 = ssub.s32 192, 192
          %191 = vsyncadd %s185, %s190
          %s192 = smul.addr %s26, 3
          %s193 = smul.addr %s25, 3
          %s194 = sadd.s32 %s192, %s193
          %s195 = smul.addr %s194, 64
          %s196 = scalar_lea.hbm %s1, %s195
          %s198 = sshll.u32 %s188, 4
          %s199 = int_to_ptr.vmem [resolvable:$true] %s198
          %201 = dma.hbm_to_vmem [thread:$0]  %s196, 192, %s199, %s185
        $region28: #{tpu_custom_call.1} parent=19 // pred_fallthru
          _
      $region20: #{tpu_custom_call.1} parent=5 // pred_fallthru
        _
      %p202 = scmp.le.s32.totalorder 1, %s18
      %p203 = scmp.lt.s32.totalorder %s18, 3
      %p204 = pnand %p202, %p203
      %p205 = pneg %p204
      // Predicated region
      $region29: #{tpu_custom_call.1} parent=5 // pred_check
        _
      $region30: #{tpu_custom_call.1} parent=5 // pred_check_branch
        %207 = sbr.rel (%p204) target = $region32
      $region31: #{tpu_custom_call.1} parent=5 // pred_region
        %s208 = ssub.s32 %s18, 1
        %s209 = sand.u32 %s43, 1
        %s210 = scalar_lea.sflag [#allocation4], %s209
        %s211 = sand.u32 %s43, 1
        %s212 = smul.addr %s211, 4
        %s213 = scalar_lea.vmem [#allocation3], %s212
        // Predicated region
        $region33: #{tpu_custom_call.1} parent=31 // pred_check
          %p214 = pneg %p56
        $region34: #{tpu_custom_call.1} parent=31 // pred_check_branch
          %216 = sbr.rel (%p214) target = $region36
        $region35: #{tpu_custom_call.1} parent=31 // pred_region
          %217 = dma.done %s210, 64
        $region36: #{tpu_custom_call.1} parent=31 // pred_fallthru
          _
        %s218 = sand.u32 %s23, 1
        %s219 = scalar_lea.sflag [#allocation7], %s218
        %s220 = sand.u32 %s71, 1
        %s221 = smul.addr %s220, 12
        %s222 = scalar_lea.vmem [#allocation6], %s221
        // Predicated region
        $region37: #{tpu_custom_call.1} parent=31 // pred_check
          %p223 = pneg %p84
        $region38: #{tpu_custom_call.1} parent=31 // pred_check_branch
          %225 = sbr.rel (%p223) target = $region40
        $region39: #{tpu_custom_call.1} parent=31 // pred_region
          %226 = dma.done %s219, 192
        $region40: #{tpu_custom_call.1} parent=31 // pred_fallthru
          _
        // Predicated region
        $region41: #{tpu_custom_call.1} parent=31 // pred_check
          %p227 = pneg %p105
        $region42: #{tpu_custom_call.1} parent=31 // pred_check_branch
          %229 = sbr.rel (%p227) target = $region44
        $region43: #{tpu_custom_call.1} parent=31 // pred_region
          %230 = dma.done [#allocation7], 128
        $region44: #{tpu_custom_call.1} parent=31 // pred_fallthru
          _
        %s231 = sand.u32 %s43, 1
        %s232 = scalar_lea.sflag [#allocation4], %s231
        %s233 = sand.u32 %s43, 1
        %s234 = smul.addr %s233, 4
        %s235 = scalar_lea.vmem [#allocation3], %s234
        %p236 = pneg %p56
        %p237 = pneg %p53
        %s238 = sand.u32 %s23, 1
        %s239 = scalar_lea.sflag [#allocation7], %s238
        %s240 = sand.u32 %s71, 1
        %s241 = smul.addr %s240, 12
        %s242 = scalar_lea.vmem [#allocation6], %s241
        %p243 = pneg %p84
        %p244 = pneg %p81
        %p245 = pneg %p105
        %p246 = pneg %p102
        %p247 = pneg %p133
        %p248 = pneg %p130
        %s249 = sand.u32 %s120, 1
        %s250 = scalar_lea.sflag [#allocation5], %s249
        %s251 = sand.u32 %s120, 1
        %s252 = smul.addr %s251, 8
        %s253 = scalar_lea.vmem [#allocation9], %s252
        %s254 = smul.u32 2, %s28
        %255 = vst [vmem:[#allocation2] sm:$0xf0] 0.0
        %256 = vst [vmem:[#allocation2 + $0x8] sm:$0xf0] 0.0
        %257 = vst [vmem:[#allocation2 + $0x10] sm:$0xf0] 0.0
        %258 = vst [vmem:[#allocation2 + $0x18] sm:$0xf0] 0.0
        %259 = vst [vmem:[#allocation2 + $0x20] sm:$0xf0] 0.0
        %260 = vst [vmem:[#allocation2 + $0x28] sm:$0xf0] 0.0
        %261 = vst [vmem:[#allocation2 + $0x30] sm:$0xf0] 0.0
        %262 = vst [vmem:[#allocation2 + $0x38] sm:$0xf0] 0.0
        %263 = vst [vmem:[#allocation2 + $0x40] sm:$0xf0] 0.0
        %264 = vst [vmem:[#allocation2 + $0x48] sm:$0xf0] 0.0
        %265 = vst [vmem:[#allocation2 + $0x50] sm:$0xf0] 0.0
        %266 = vst [vmem:[#allocation2 + $0x58] sm:$0xf0] 0.0
        %267 = vst [vmem:[#allocation2 + $0x60] sm:$0xf0] 0.0
        %268 = vst [vmem:[#allocation2 + $0x68] sm:$0xf0] 0.0
        %269 = vst [vmem:[#allocation2 + $0x70] sm:$0xf0] 0.0
        %270 = vst [vmem:[#allocation2 + $0x78] sm:$0xf0] 0.0
        %271 = vst [vmem:[#allocation2 + $0x80] sm:$0xf0] 0.0
        %272 = vst [vmem:[#allocation2 + $0x88] sm:$0xf0] 0.0
        %v273 = vld [vmem:[%s222] sm:$0xff]
        %v274 = vld [vmem:[#allocation8] ss:$4 sm:$0x3]
        %v276 = vlaneseq
        %v277 = vshrl.u32 %v276, 7
        %v278 = vsub.s32 0, %v277
        %v279 = vrot.slane %v274, %v278
        %v280 = vlaneseq
        %v281 = vshrl.u32 %v280, 7
        %v282 = vsub.s32 1, %v281
        %v283 = vrot.slane %v274, %v282
        %v284 = vcombine.low %v279, %v283
        %v286 = vmul.f32 %v273, %v284
        %v288 = vcombine.high %v286, %v286
        %290 = vst [vmem:[#allocation2] sm:$0xf] %v286
        %291 = vst [vmem:[#allocation2 + $0x8] sm:$0xf] %v288
        %v292 = vld [vmem:[%s222] sm:$0xff]
        %v293 = vld [vmem:[%s222 + $0x8] sm:$0xf]
        %v296 = vcombine.high %v292, %v292
        %297 = vrot.lane.b32.xlu0 %v292, 127
        %v298 = vpop.permute.xlu0 %297
        %299 = vrot.lane.b32.xlu0 %v296, 127
        %v300 = vpop.permute.xlu0 %299
        %301 = vrot.lane.b32.xlu0 %v293, 127
        %v302 = vpop.permute.xlu0 %301
        %vm303 = vcmask 1039360
        %v304 = vsel %vm303, %v298, %v300
        %v305 = vsel %vm303, %v300, %v302
        %308 = vst [vmem:[#allocation2 + $0x10] sm:$0xf] %v304
        %309 = vst [vmem:[#allocation2 + $0x18] sm:$0xf] %v305
        %v310 = vld [vmem:[%s222] sm:$0xff]
        %v311 = vld [vmem:[%s222 + $0x8] sm:$0xf]
        %s312 = scalar_lea.vmem [#allocation8], 2
        %v313 = vld [vmem:[%s312] ss:$4 sm:$0x3]
        %v315 = vlaneseq
        %v316 = vshrl.u32 %v315, 7
        %v317 = vsub.s32 0, %v316
        %v318 = vrot.slane %v313, %v317
        %v319 = vlaneseq
        %v320 = vshrl.u32 %v319, 7
        %v321 = vsub.s32 1, %v320
        %v322 = vrot.slane %v313, %v321
        %v323 = vcombine.low %v318, %v322
        %324 = vrot.lane.b32.xlu0 %v323, 2
        %v325 = vpop.permute.xlu0 %324
        %v326 = vrot.slane %v325, 4
        %vm327 = vcmask 15360
        %v328 = vsel %vm327, %v326, %v325
        %v331 = vmul.f32 %v310, %v328
        %v332 = vmul.f32 %v311, %v326
        %v335 = vcombine.high %v331, %v331
        %336 = vrot.lane.b32.xlu0 %v331, 126
        %v337 = vpop.permute.xlu0 %336
        %338 = vrot.lane.b32.xlu0 %v335, 126
        %v339 = vpop.permute.xlu0 %338
        %340 = vrot.lane.b32.xlu0 %v332, 126
        %v341 = vpop.permute.xlu0 %340
        %vm342 = vcmask 1031168
        %v343 = vsel %vm342, %v337, %v339
        %v344 = vsel %vm342, %v339, %v341
        %347 = vst [vmem:[#allocation2 + $0x20] sm:$0xf] %v343
        %348 = vst [vmem:[#allocation2 + $0x28] sm:$0xf] %v344
        %v349 = vld [vmem:[%s222] sm:$0xff]
        %v350 = vld [vmem:[%s222 + $0x8] sm:$0xf]
        %v351 = vld [vmem:[#allocation8] ss:$4 sm:$0x3]
        %v353 = vlaneseq
        %v354 = vshrl.u32 %v353, 7
        %v355 = vsub.s32 0, %v354
        %v356 = vrot.slane %v351, %v355
        %v357 = vlaneseq
        %v358 = vshrl.u32 %v357, 7
        %v359 = vsub.s32 1, %v358
        %v360 = vrot.slane %v351, %v359
        %v361 = vcombine.low %v356, %v360
        %362 = vrot.lane.b32.xlu0 %v361, 16
        %v363 = vpop.permute.xlu0 %362
        %v364 = vrot.slane %v363, 4
        %vm365 = vcmask 130048
        %v366 = vsel %vm365, %v364, %v363
        %v369 = vmul.f32 %v349, %v366
        %v370 = vmul.f32 %v350, %v364
        %v373 = vcombine.high %v369, %v369
        %374 = vrot.lane.b32.xlu0 %v369, 112
        %v375 = vpop.permute.xlu0 %374
        %376 = vrot.lane.b32.xlu0 %v373, 112
        %v377 = vpop.permute.xlu0 %376
        %378 = vrot.lane.b32.xlu0 %v370, 112
        %v379 = vpop.permute.xlu0 %378
        %vm380 = vcmask 916480
        %v381 = vsel %vm380, %v375, %v377
        %v382 = vsel %vm380, %v377, %v379
        %385 = vst [vmem:[#allocation2 + $0x30] sm:$0xf] %v381
        %386 = vst [vmem:[#allocation2 + $0x38] sm:$0xf] %v382
        %v387 = vld [vmem:[%s222] sm:$0xff]
        %v388 = vld [vmem:[%s222 + $0x8] sm:$0xf]
        %v391 = vcombine.high %v387, %v387
        %392 = vrot.lane.b32.xlu0 %v387, 111
        %v393 = vpop.permute.xlu0 %392
        %394 = vrot.lane.b32.xlu0 %v391, 111
        %v395 = vpop.permute.xlu0 %394
        %396 = vrot.lane.b32.xlu0 %v388, 111
        %v397 = vpop.permute.xlu0 %396
        %vm398 = vcmask 908288
        %v399 = vsel %vm398, %v393, %v395
        %v400 = vsel %vm398, %v395, %v397
        %403 = vst [vmem:[#allocation2 + $0x40] sm:$0xf] %v399
        %404 = vst [vmem:[#allocation2 + $0x48] sm:$0xf] %v400
        %v405 = vld [vmem:[%s222] sm:$0xff]
        %v406 = vld [vmem:[%s222 + $0x8] sm:$0xf]
        %v407 = vld [vmem:[%s312] ss:$4 sm:$0x3]
        %v409 = vlaneseq
        %v410 = vshrl.u32 %v409, 7
        %v411 = vsub.s32 0, %v410
        %v412 = vrot.slane %v407, %v411
        %v413 = vlaneseq
        %v414 = vshrl.u32 %v413, 7
        %v415 = vsub.s32 1, %v414
        %v416 = vrot.slane %v407, %v415
        %v417 = vcombine.low %v412, %v416
        %418 = vrot.lane.b32.xlu0 %v417, 18
        %v419 = vpop.permute.xlu0 %418
        %v420 = vrot.slane %v419, 4
        %vm421 = vcmask 146432
        %v422 = vsel %vm421, %v420, %v419
        %v425 = vmul.f32 %v405, %v422
        %v426 = vmul.f32 %v406, %v420
        %v429 = vcombine.high %v425, %v425
        %430 = vrot.lane.b32.xlu0 %v425, 110
        %v431 = vpop.permute.xlu0 %430
        %432 = vrot.lane.b32.xlu0 %v429, 110
        %v433 = vpop.permute.xlu0 %432
        %434 = vrot.lane.b32.xlu0 %v426, 110
        %v435 = vpop.permute.xlu0 %434
        %vm436 = vcmask 900096
        %v437 = vsel %vm436, %v431, %v433
        %v438 = vsel %vm436, %v433, %v435
        %441 = vst [vmem:[#allocation2 + $0x50] sm:$0xf] %v437
        %442 = vst [vmem:[#allocation2 + $0x58] sm:$0xf] %v438
        %v443 = vld [vmem:[%s222] sm:$0xff]
        %v444 = vld [vmem:[%s222 + $0x8] sm:$0xf]
        %v445 = vld [vmem:[#allocation8] ss:$4 sm:$0x3]
        %v447 = vlaneseq
        %v448 = vshrl.u32 %v447, 7
        %v449 = vsub.s32 0, %v448
        %v450 = vrot.slane %v445, %v449
        %v451 = vlaneseq
        %v452 = vshrl.u32 %v451, 7
        %v453 = vsub.s32 1, %v452
        %v454 = vrot.slane %v445, %v453
        %v455 = vcombine.low %v450, %v454
        %456 = vrot.lane.b32.xlu0 %v455, 32
        %v457 = vpop.permute.xlu0 %456
        %v458 = vrot.slane %v457, 4
        %vm459 = vcmask 261120
        %v460 = vsel %vm459, %v458, %v457
        %v463 = vmul.f32 %v443, %v460
        %v464 = vmul.f32 %v444, %v458
        %v467 = vcombine.high %v463, %v463
        %468 = vrot.lane.b32.xlu0 %v463, 96
        %v469 = vpop.permute.xlu0 %468
        %470 = vrot.lane.b32.xlu0 %v467, 96
        %v471 = vpop.permute.xlu0 %470
        %472 = vrot.lane.b32.xlu0 %v464, 96
        %v473 = vpop.permute.xlu0 %472
        %vm474 = vcmask 785408
        %v475 = vsel %vm474, %v469, %v471
        %v476 = vsel %vm474, %v471, %v473
        %479 = vst [vmem:[#allocation2 + $0x60] sm:$0xf] %v475
        %480 = vst [vmem:[#allocation2 + $0x68] sm:$0xf] %v476
        %v481 = vld [vmem:[%s222] sm:$0xff]
        %v482 = vld [vmem:[%s222 + $0x8] sm:$0xf]
        %v485 = vcombine.high %v481, %v481
        %486 = vrot.lane.b32.xlu0 %v481, 95
        %v487 = vpop.permute.xlu0 %486
        %488 = vrot.lane.b32.xlu0 %v485, 95
        %v489 = vpop.permute.xlu0 %488
        %490 = vrot.lane.b32.xlu0 %v482, 95
        %v491 = vpop.permute.xlu0 %490
        %vm492 = vcmask 777216
        %v493 = vsel %vm492, %v487, %v489
        %v494 = vsel %vm492, %v489, %v491
        %497 = vst [vmem:[#allocation2 + $0x70] sm:$0xf] %v493
        %498 = vst [vmem:[#allocation2 + $0x78] sm:$0xf] %v494
        %v499 = vld [vmem:[%s222] sm:$0xff]
        %v500 = vld [vmem:[%s222 + $0x8] sm:$0xf]
        %v501 = vld [vmem:[%s312] ss:$4 sm:$0x3]
        %v503 = vlaneseq
        %v504 = vshrl.u32 %v503, 7
        %v505 = vsub.s32 0, %v504
        %v506 = vrot.slane %v501, %v505
        %v507 = vlaneseq
        %v508 = vshrl.u32 %v507, 7
        %v509 = vsub.s32 1, %v508
        %v510 = vrot.slane %v501, %v509
        %v511 = vcombine.low %v506, %v510
        %512 = vrot.lane.b32.xlu0 %v511, 34
        %v513 = vpop.permute.xlu0 %512
        %v514 = vrot.slane %v513, 4
        %vm515 = vcmask 277504
        %v516 = vsel %vm515, %v514, %v513
        %v519 = vmul.f32 %v499, %v516
        %v520 = vmul.f32 %v500, %v514
        %v523 = vcombine.high %v519, %v519
        %524 = vrot.lane.b32.xlu0 %v519, 94
        %v525 = vpop.permute.xlu0 %524
        %526 = vrot.lane.b32.xlu0 %v523, 94
        %v527 = vpop.permute.xlu0 %526
        %528 = vrot.lane.b32.xlu0 %v520, 94
        %v529 = vpop.permute.xlu0 %528
        %vm530 = vcmask 769024
        %v531 = vsel %vm530, %v525, %v527
        %v532 = vsel %vm530, %v527, %v529
        %535 = vst [vmem:[#allocation2 + $0x80] sm:$0xf] %v531
        %536 = vst [vmem:[#allocation2 + $0x88] sm:$0xf] %v532
        %v537 = vld [vmem:[%s213] sm:$0xf]
        %v538 = vld [vmem:[#allocation2] sm:$0xff]
        %v539 = vld [vmem:[#allocation2 + $0x8] sm:$0xff]
        %v540 = vld [vmem:[#allocation2 + $0x10] sm:$0xff]
        %v541 = vld [vmem:[#allocation2 + $0x18] sm:$0xff]
        %v542 = vld [vmem:[#allocation2 + $0x20] sm:$0xff]
        %v543 = vld [vmem:[#allocation2 + $0x28] sm:$0xff]
        %v544 = vld [vmem:[#allocation2 + $0x30] sm:$0xff]
        %v545 = vld [vmem:[#allocation2 + $0x38] sm:$0xff]
        %v546 = vld [vmem:[#allocation2 + $0x40] sm:$0xff]
        %v547 = vld [vmem:[#allocation2 + $0x48] sm:$0xff]
        %v548 = vld [vmem:[#allocation2 + $0x50] sm:$0xff]
        %v549 = vld [vmem:[#allocation2 + $0x58] sm:$0xff]
        %v550 = vld [vmem:[#allocation2 + $0x60] sm:$0xff]
        %v551 = vld [vmem:[#allocation2 + $0x68] sm:$0xff]
        %v552 = vld [vmem:[#allocation2 + $0x70] sm:$0xff]
        %v553 = vld [vmem:[#allocation2 + $0x78] sm:$0xff]
        %v554 = vld [vmem:[#allocation2 + $0x80] sm:$0xff]
        %v555 = vld [vmem:[#allocation2 + $0x88] sm:$0xff]
        %vm556 = vcmask 588800
        %v558 = vsel %vm556, %v537, 0
        %560 = vmatprep.subr.mxu0 %v539
        %561 = vmatpush1.msra.mxu0 %v538
        %562 = vmatprep.subr.mxu0 %v541
        %563 = vmatpush1.msra.mxu0 %v540
        %564 = vmatprep.subr.mxu0 %v543
        %565 = vmatpush1.msra.mxu0 %v542
        %566 = vmatprep.subr.mxu0 %v545
        %567 = vmatpush1.msra.mxu0 %v544
        %568 = vmatprep.subr.mxu0 %v547
        %569 = vmatpush1.msra.mxu0 %v546
        %570 = vmatprep.subr.mxu0 %v549
        %571 = vmatpush1.msra.mxu0 %v548
        %572 = vmatprep.subr.mxu0 %v551
        %573 = vmatpush1.msra.mxu0 %v550
        %574 = vmatprep.subr.mxu0 %v553
        %575 = vmatpush1.msra.mxu0 %v552
        %576 = vmatprep.subr.mxu0 %v555
        %577 = vmatpush1.msra.mxu0 %v554
        %578 = vmatprep.subr.mxu0 0.0
        %579 = vmatpush1.msra.mxu0 0.0
        %580 = vmatprep.subr.mxu0 0.0
        %581 = vmatpush1.msra.mxu0 0.0
        %582 = vmatprep.subr.mxu0 0.0
        %583 = vmatpush1.msra.mxu0 0.0
        %584 = vmatprep.subr.mxu0 0.0
        %585 = vmatpush1.msra.mxu0 0.0
        %586 = vmatprep.subr.mxu0 0.0
        %587 = vmatpush1.msra.mxu0 0.0
        %588 = vmatprep.subr.mxu0 0.0
        %589 = vmatpush1.msra.mxu0 0.0
        %590 = vmatprep.subr.mxu0 0.0
        %591 = vmatpush1.msra.mxu0 0.0
        %592 = vmatprep.subr.mxu0 0.0
        %593 = vmatpush1.msra.mxu0 0.0
        %594 = vmatprep.subr.mxu0 0.0
        %595 = vmatpush1.msra.mxu0 0.0
        %596 = vmatprep.subr.mxu0 0.0
        %597 = vmatpush1.msra.mxu0 0.0
        %598 = vmatprep.subr.mxu0 0.0
        %599 = vmatpush1.msra.mxu0 0.0
        %600 = vmatprep.subr.mxu0 0.0
        %601 = vmatpush1.msra.mxu0 0.0
        %602 = vmatprep.subr.mxu0 0.0
        %603 = vmatpush1.msra.mxu0 0.0
        %604 = vmatprep.subr.mxu0 0.0
        %605 = vmatpush1.msra.mxu0 0.0
        %606 = vmatprep.subr.mxu0 0.0
        %607 = vmatpush1.msra.mxu0 0.0
        %608 = vmatprep.subr.mxu0 0.0
        %609 = vmatpush1.msra.mxu0 0.0
        %610 = vmatprep.subr.mxu0 0.0
        %611 = vmatpush1.msra.mxu0 0.0
        %612 = vmatprep.subr.mxu0 0.0
        %613 = vmatpush1.msra.mxu0 0.0
        %614 = vmatprep.subr.mxu0 0.0
        %615 = vmatpush1.msra.mxu0 0.0
        %616 = vmatprep.subr.mxu0 0.0
        %617 = vmatpush1.msra.mxu0 0.0
        %618 = vmatprep.subr.mxu0 0.0
        %619 = vmatpush1.msra.mxu0 0.0
        %620 = vmatprep.subr.mxu0 0.0
        %621 = vmatpush1.msra.mxu0 0.0
        %622 = vmatprep.subr.mxu0 0.0
        %623 = vmatpush1.msra.mxu0 0.0
        %624 = vmatprep.mubr.f32.mxu0 0.0
        %625 = vmatmul.mubr.f32.gmra.mrb[0].mxu0 %v558
        %v626 = vpop.f32.mrb[0].mxu0
        %v627 = vadd.f32 0.0, %v626
        %v628 = vpop.f32.mrb[0].mxu0
        %v629 = vadd.f32 0.0, %v628
        %630 = vdwg.mxu0
        %v633 = vcombine.low %v627, %v629
        %635 = vst [vmem:[%s253] sm:$0xff] %v633
        %s636 = sand.u32 %s120, 1
        %s637 = scalar_lea.sflag [#allocation5], %s636
        %s638 = sand.u32 %s120, 1
        %s639 = smul.addr %s638, 8
        %s640 = scalar_lea.vmem [#allocation9], %s639
        // Predicated region
        $region45: #{tpu_custom_call.1} parent=31 // pred_check
          %p641 = pneg %p130
        $region46: #{tpu_custom_call.1} parent=31 // pred_check_branch
          %643 = sbr.rel (%p641) target = $region48
        $region47: #{tpu_custom_call.1} parent=31 // pred_region
          %s644 = smul.u32 2, %s28
          %s646 = ssub.s32 128, 128
          %647 = vsyncadd %s637, %s646
          %s648 = smul.addr %s27, 2
          %s649 = sadd.s32 %s644, %s648
          %s650 = smul.addr %s649, 64
          %s651 = scalar_lea.hbm %s3, %s650
          %s653 = sshll.u32 %s640, 4
          %s654 = int_to_ptr.vmem [resolvable:$true] %s653
          %656 = dma.vmem_to_hbm [thread:$0]  %s654, 128, %s651, %s637
        $region48: #{tpu_custom_call.1} parent=31 // pred_fallthru
          _
      $region32: #{tpu_custom_call.1} parent=5 // pred_fallthru
        _
      %p657 = scmp.le.s32.totalorder 2, %s18
      // Predicated region
      $region49: #{tpu_custom_call.1} parent=5 // pred_check
        %p658 = pneg %p657
      $region50: #{tpu_custom_call.1} parent=5 // pred_check_branch
        %660 = sbr.rel (%p658) target = $region52
      $region51: #{tpu_custom_call.1} parent=5 // pred_region
        %s661 = ssub.s32 %s18, 2
        // Predicated region
        $region53: #{tpu_custom_call.1} parent=51 // pred_check
          %p662 = pneg %p136
        $region54: #{tpu_custom_call.1} parent=51 // pred_check_branch
          %664 = sbr.rel (%p662) target = $region56
        $region55: #{tpu_custom_call.1} parent=51 // pred_region
          %s665 = sand.u32 %s121, 1
          %s666 = scalar_lea.sflag [#allocation5], %s665
          %s667 = sand.u32 %s121, 1
          %s668 = smul.addr %s667, 8
          %s669 = scalar_lea.vmem [#allocation9], %s668
          %670 = dma.done %s666, 128
        $region56: #{tpu_custom_call.1} parent=51 // pred_fallthru
          _
      $region52: #{tpu_custom_call.1} parent=5 // pred_fallthru
        _
    $region6: #{tpu_custom_call.1} parent=1 // loop_footer
      %s22 = sadd.s32 1, %s18
    $region7: #{tpu_custom_call.1} parent=1 // loop_footer_branch
      %17 = sbr.rel target = $region3
    $region8: #{tpu_custom_call.1} parent=1 // loop_exit
      _
    %671 = vsyncpa [#allocation4], 1
    %s672 = scalar_lea.sflag [#allocation4], 1
    %673 = vsyncpa %s672, 1
    %674 = vsyncpa [#allocation7], 1
    %s675 = scalar_lea.sflag [#allocation7], 1
    %676 = vsyncpa %s675, 1
    %677 = vsyncpa [#allocation5], 1
    %s678 = scalar_lea.sflag [#allocation5], 1
    %679 = vsyncpa %s678, 1

</llo_original>
